<compile_context>
chip_gen: v5e
topology: v5e:2x2
jax: 0.10.0
libtpu: 0.0.40
codegen_flags: <defaults>
</compile_context>

<pallas_src>
import functools

import numpy as np
import jax
import jax.numpy as jnp
from jax.experimental import pallas as pl
from jax.experimental.pallas import tpu as pltpu


def _round_up(x, m):
    return (x + m - 1) // m * m


def _pedal_kernel(camid_ref, cam_ref, c2_ref, feat_ref, cent_ref, out_ref, *,
                  scale, n_valid, m_valid):
    # camid_ref: (tm, 1)  int32   camera id of each sample row in this tile
    # cam_ref  : (1, Np)  int32   camera id of each center
    # c2_ref   : (1,1,Np) f32     ||c_j||^2 for this part (precomputed)
    # feat_ref : (1,tm,Dp) bf16   feature rows of this (part, row-tile)
    # cent_ref : (1,Np,Dp) bf16   centers of this part
    # out_ref  : (1,1,1,1) f32    partial loss of this (part, row-tile)
    feat = feat_ref[0]                       # (tm, Dp)
    cent = cent_ref[0]                       # (Np, Dp)
    tm = feat.shape[0]
    npad = cent.shape[0]

    # dist[i,j] = ||f_i||^2 + ||c_j||^2 - 2 f_i.c_j.  ||f_i||^2 is a per-row
    # constant that cancels in the row-min shift and in the hinge, so drop it.
    # bf16-fed MXU matmul, f32 accumulation.
    fc = jax.lax.dot_general(feat, cent, (((1,), (1,)), ((), ())),
                             preferred_element_type=jnp.float32)      # (tm, Np)
    dred = c2_ref[0] - 2.0 * fc                                       # (tm, Np) f32

    col = jax.lax.broadcasted_iota(jnp.int32, (1, npad), 1)           # (1, Np)
    dred = jnp.where(col < n_valid, dred, jnp.float32(jnp.inf))       # pad cols -> +inf

    # Single full-tile exp, shifted by the per-row min (robust; shift cancels
    # exactly in the log ratio).  exp(-inf) == 0.
    shift = jnp.min(dred, axis=1, keepdims=True)                      # (tm, 1)
    e = jnp.exp(-scale * (dred - shift))                              # (tm, Np) in [0,1]

    mask_intra = camid_ref[...] == cam_ref[...]                       # (tm, Np) bool
    e_intra = jnp.where(mask_intra, e, 0.0)

    # Stack the two independent extraction problems along sublanes:
    #   rows [0, tm)    -> intra (same camera),   k_head=4,  k_drop=6
    #   rows [tm, 2*tm) -> inter (other cameras), k_head=8,  k_drop=12
    # One 12-step loop advances BOTH chains with a single XLU reduce per step.
    v = jnp.concatenate([e_intra, e - e_intra], axis=0)               # (2tm, Np)

    # Fused max+argmax key: e >= 0, so its int32 bit pattern is order-preserving.
    # Clear the low bits and pack the column index there; hoisted out of the loop.
    low_bits = max((npad - 1).bit_length(), 1)
    low_mask = jnp.int32((1 << low_bits) - 1)
    hi_mask = jnp.int32(-(1 << low_bits))
    removed_key = jnp.int32(jnp.iinfo(jnp.int32).min)
    key = (pltpu.bitcast(v, jnp.int32) & hi_mask) | col               # (2tm, Np)

    # head = sum of k_head largest = total - remaining_after_k_head
    # tail = remaining_after_k_drop = exp-sum of sorted[k_drop:]
    total = jnp.sum(v, axis=1, keepdims=True)                         # (2tm, 1)
    rem4 = rem6 = rem8 = None
    for j in range(12):
        if j == 4:
            rem4 = jnp.sum(v, axis=1, keepdims=True)
        elif j == 6:
            rem6 = jnp.sum(v, axis=1, keepdims=True)
        elif j == 8:
            rem8 = jnp.sum(v, axis=1, keepdims=True)
        kmax = jnp.max(key, axis=1, keepdims=True)                    # 1 XLU reduce / step
        sel = kmax & low_mask                                         # column of the row max
        hit = col == sel                                              # (2tm, Np)
        key = jnp.where(hit, removed_key, key)                        # never re-selected
        v = jnp.where(hit, 0.0, v)                                    # remove exactly one
    rem12 = jnp.sum(v, axis=1, keepdims=True)

    head_intra = total[:tm] - rem4[:tm]
    tail_intra = rem6[:tm]
    head_inter = total[tm:] - rem8[tm:]
    tail_inter = rem12[tm:]

    h_intra = jnp.maximum(jnp.log(tail_intra) - jnp.log(head_intra) + 12.0, 0.0)
    h_inter = jnp.maximum(jnp.log(tail_inter) - jnp.log(head_inter) + 5.0, 0.0)
    h_row = h_intra + h_inter                                         # (tm, 1)

    row = jax.lax.broadcasted_iota(jnp.int32, (tm, 1), 0) + pl.program_id(1) * tm
    h_row = jnp.where(row < m_valid, h_row, 0.0)                      # drop padded rows

    out_ref[0, 0] = jnp.sum(h_row, axis=0, keepdims=True)             # (1, 1) partial loss


def pedal_loss(feature, camid, centers, cam, scale=15.0):
    """Pallas equivalent of Pedal.forward(feature, camid, centers, cam)."""
    P, M, D = feature.shape
    N = centers.shape[1]

    tm = min(_round_up(M, 8), 256)        # row tile (multiple of 8)
    m_pad = _round_up(M, tm)
    mt = m_pad // tm
    n_pad = _round_up(N, 128)             # lane-dense columns
    d_pad = _round_up(D, 128)             # lane-dense MXU contraction

    feature = feature.astype(jnp.float32)
    centers = centers.astype(jnp.float32)

    # ||c_j||^2 once per part in the wrapper (invariant across row tiles).
    c2 = jnp.sum(centers * centers, axis=-1)[:, None, :]              # (P, 1, N) f32
    c2 = jnp.pad(c2, ((0, 0), (0, 0), (0, n_pad - N)))

    # Zero padding along D does not change the dot products; matmul inputs in
    # bf16 (MXU native rate, half the centers DMA), f32 accumulation in-kernel.
    feature_p = jnp.pad(feature, ((0, 0), (0, m_pad - M), (0, d_pad - D))
                        ).astype(jnp.bfloat16)
    centers_p = jnp.pad(centers, ((0, 0), (0, n_pad - N), (0, d_pad - D))
                        ).astype(jnp.bfloat16)
    camid_p = jnp.pad(camid.astype(jnp.int32), (0, m_pad - M),
                      constant_values=-1).reshape(m_pad, 1)
    cam_p = jnp.pad(cam.astype(jnp.int32), (0, n_pad - N),
                    constant_values=-2).reshape(1, n_pad)

    kernel = functools.partial(_pedal_kernel, scale=float(scale),
                               n_valid=N, m_valid=M)

    # TODO(synk): for very large N*D add a D-reduction grid axis (accumulate fc
    # into a (tm, n_pad) VMEM scratch, run exp/top-k under pl.when(last k)) and
    # optionally pipeline_mode=pl.Buffered(1) on centers so the centers slab
    # fits v7x's 64 MiB VMEM.
    part_losses = pl.pallas_call(
        kernel,
        out_shape=jax.ShapeDtypeStruct((P, mt, 1, 1), jnp.float32),
        grid_spec=pltpu.PrefetchScalarGridSpec(
            num_scalar_prefetch=0,
            grid=(P, mt),
            in_specs=[
                pl.BlockSpec((tm, 1), lambda p, i: (i, 0)),              # camid rows
                pl.BlockSpec((1, n_pad), lambda p, i: (0, 0)),           # cam
                pl.BlockSpec((1, 1, n_pad), lambda p, i: (p, 0, 0)),     # ||c||^2
                pl.BlockSpec((1, tm, d_pad), lambda p, i: (p, i, 0)),    # feature tile
                pl.BlockSpec((1, n_pad, d_pad), lambda p, i: (p, 0, 0)), # centers (part p)
            ],
            out_specs=pl.BlockSpec((1, 1, 1, 1), lambda p, i: (p, i, 0, 0)),
        ),
        compiler_params=pltpu.CompilerParams(
            dimension_semantics=("parallel", "parallel"),   # parts & row tiles independent
            vmem_limit_bytes=48 * 1024 * 1024),
    )(camid_p, cam_p, c2, feature_p, centers_p)

    # loss.div(feature.size(1)).div(feature.size(0))
    return jnp.sum(part_losses) / (M * P)


def _reference_pedal(feature, camid, centers, cam, scale=15.0):
    """Pure NumPy replica of the PyTorch forward (float64) for verification."""
    feature = np.asarray(feature, np.float64)
    centers = np.asarray(centers, np.float64)
    camid = np.asarray(camid)
    cam = np.asarray(cam)
    P, M, _ = feature.shape
    loss = 0.0
    for p in range(P):
        f, c = feature[p], centers[p]
        dist = (f ** 2).sum(1)[:, None] + (c ** 2).sum(1)[None, :] - 2.0 * f @ c.T
        mask = camid[:, None] == cam[None, :]
        for i in range(M):
            neg = np.sort(dist[i][mask[i]])
            neg2 = np.sort(dist[i][~mask[i]])
            x_intra = np.log(np.exp(-scale * neg[:4]).sum())
            y_intra = np.log(np.exp(-scale * neg[6:]).sum())
            x_inter = np.log(np.exp(-scale * neg2[:8]).sum())
            y_inter = np.log(np.exp(-scale * neg2[12:]).sum())
            loss += max(-x_intra + y_intra + 12.0, 0.0)
            loss += max(-x_inter + y_inter + 5.0, 0.0)
    return loss / M / P


if __name__ == "__main__":
    # Small deterministic shapes: P parts, M samples, N centers, D feature dim.
    P, M, N, D = 2, 8, 64, 32
    key = jax.random.PRNGKey(0)
    kf, kc = jax.random.split(key)

    # Scale features/centers so exp(-scale * dist) stays in a sane range
    # (the reference module is numerically naive; the kernel adds a row shift).
    feature = 0.1 * jax.random.normal(kf, (P, M, D), dtype=jnp.float32)
    centers = 0.1 * jax.random.normal(kc, (P, N, D), dtype=jnp.float32)
    camid = jnp.arange(M, dtype=jnp.int32) % 4   # camera id per sample
    cam = jnp.arange(N, dtype=jnp.int32) % 4     # camera id per center

    loss = pedal_loss(feature, camid, centers, cam, scale=15.0)
    loss = jax.block_until_ready(loss)

    ref = _reference_pedal(np.asarray(feature), np.asarray(camid),
                           np.asarray(centers), np.asarray(cam), scale=15.0)
    # Tolerance accounts for bf16-fed matmul inputs (distances ~5e-4 abs error,
    # amplified by scale=15 through the log-sum-exp ratio).
    np.testing.assert_allclose(np.float64(loss), ref, rtol=2e-2, atol=2e-2)

    print("KERNEL_OK")
</pallas_src>

<mosaic_0001>
module attributes {stable_mosaic.version = 11 : i64} {
  func.func @_pedal_kernel(%arg0: i32, %arg1: i32, %arg2: memref<8x1xi32, #tpu.memory_space<vmem>>, %arg3: memref<1x128xi32, #tpu.memory_space<vmem>>, %arg4: memref<1x1x128xf32, #tpu.memory_space<vmem>>, %arg5: memref<1x8x128xbf16, #tpu.memory_space<vmem>>, %arg6: memref<1x128x128xbf16, #tpu.memory_space<vmem>>, %arg7: memref<1x1x1x1xf32, #tpu.memory_space<vmem>>) attributes {dimension_semantics = [#tpu.dimension_semantics<parallel>, #tpu.dimension_semantics<parallel>], iteration_bounds = array<i64: 2, 1>, scalar_prefetch = 0 : i64, scratch_operands = 0 : i64, tpu.core_type = #tpu.core_type<tc>, window_params = [{transform_indices = @transform_0, window_bounds = array<i64: 8, 1>}, {pipeline_mode = #tpu.pipeline_mode<synchronous>, transform_indices = @transform_1, window_bounds = array<i64: 1, 128>}, {transform_indices = @transform_2, window_bounds = array<i64: 1, 1, 128>}, {transform_indices = @transform_3, window_bounds = array<i64: 1, 8, 128>}, {transform_indices = @transform_4, window_bounds = array<i64: 1, 128, 128>}, {transform_indices = @transform_5, window_bounds = array<i64: 1, 1, 1, 1>}]} {
    %c0 = arith.constant 0 : index
    %c0_0 = arith.constant 0 : index
    %c0_1 = arith.constant 0 : index
    %0 = vector.load %arg5[%c0, %c0_0, %c0_1] : memref<1x8x128xbf16, #tpu.memory_space<vmem>>, vector<1x8x128xbf16>
    %1 = vector.shape_cast %0 : vector<1x8x128xbf16> to vector<8x128xbf16>
    %c0_2 = arith.constant 0 : index
    %c0_3 = arith.constant 0 : index
    %c0_4 = arith.constant 0 : index
    %2 = vector.load %arg6[%c0_2, %c0_3, %c0_4] : memref<1x128x128xbf16, #tpu.memory_space<vmem>>, vector<1x128x128xbf16>
    %3 = vector.shape_cast %2 : vector<1x128x128xbf16> to vector<128x128xbf16>
    %cst = arith.constant dense<0.000000e+00> : vector<8x128xf32>
    %4 = tpu.matmul %1, %3, %cst {dimension_numbers = #tpu.dot_dimension_numbers<[1], [1], [0], [0], [0, 0, 1, 0], [], []>} : vector<8x128xbf16>, vector<128x128xbf16>, vector<8x128xf32> -> vector<8x128xf32>
    %c0_5 = arith.constant 0 : index
    %c0_6 = arith.constant 0 : index
    %c0_7 = arith.constant 0 : index
    %5 = vector.load %arg4[%c0_5, %c0_6, %c0_7] : memref<1x1x128xf32, #tpu.memory_space<vmem>>, vector<1x1x128xf32>
    %6 = vector.shape_cast %5 : vector<1x1x128xf32> to vector<1x128xf32>
    %cst_8 = arith.constant 2.000000e+00 : f32
    %7 = vector.broadcast %cst_8 : f32 to vector<8x128xf32>
    %8 = arith.mulf %7, %4 : vector<8x128xf32>
    %9 = vector.broadcast %6 : vector<1x128xf32> to vector<8x128xf32>
    %10 = arith.subf %9, %8 : vector<8x128xf32>
    %11 = tpu.iota {dimensions = array<i32: 1>} : vector<1x128xi32>
    %c64_i32 = arith.constant 64 : i32
    %12 = vector.broadcast %c64_i32 : i32 to vector<1x128xi32>
    %13 = arith.cmpi slt, %11, %12 : vector<1x128xi32>
    %cst_9 = arith.constant 0x7F800000 : f32
    %14 = vector.shape_cast %13 : vector<1x128xi1> to vector<1x128xi1>
    %15 = vector.broadcast %14 : vector<1x128xi1> to vector<8x128xi1>
    %16 = vector.broadcast %cst_9 : f32 to vector<8x128xf32>
    %17 = arith.select %15, %10, %16 : vector<8x128xi1>, vector<8x128xf32>
    %cst_10 = arith.constant dense<0x7F800000> : vector<8xf32>
    %18 = vector.multi_reduction <minimumf>, %17, %cst_10 [1] : vector<8x128xf32> to vector<8xf32>
    %19 = vector.shape_cast %18 : vector<8xf32> to vector<8x1xf32>
    %20 = vector.broadcast %19 : vector<8x1xf32> to vector<8x128xf32>
    %21 = arith.subf %17, %20 : vector<8x128xf32>
    %cst_11 = arith.constant -1.500000e+01 : f32
    %22 = vector.broadcast %cst_11 : f32 to vector<8x128xf32>
    %23 = arith.mulf %22, %21 : vector<8x128xf32>
    %24 = math.exp %23 : vector<8x128xf32>
    %c0_12 = arith.constant 0 : index
    %c0_13 = arith.constant 0 : index
    %25 = vector.load %arg2[%c0_12, %c0_13] : memref<8x1xi32, #tpu.memory_space<vmem>>, vector<8x1xi32>
    %c0_14 = arith.constant 0 : index
    %c0_15 = arith.constant 0 : index
    %26 = vector.load %arg3[%c0_14, %c0_15] : memref<1x128xi32, #tpu.memory_space<vmem>>, vector<1x128xi32>
    %27 = vector.broadcast %25 : vector<8x1xi32> to vector<8x128xi32>
    %28 = vector.broadcast %26 : vector<1x128xi32> to vector<8x128xi32>
    %29 = arith.cmpi eq, %27, %28 : vector<8x128xi32>
    %cst_16 = arith.constant 0.000000e+00 : f32
    %30 = vector.broadcast %cst_16 : f32 to vector<8x128xf32>
    %31 = arith.select %29, %24, %30 : vector<8x128xi1>, vector<8x128xf32>
    %32 = arith.subf %24, %31 : vector<8x128xf32>
    %33 = tpu.concatenate %31, %32 in 0 : vector<8x128xf32>, vector<8x128xf32> -> vector<16x128xf32>
    %34 = tpu.bitcast %33 : vector<16x128xf32> -> vector<16x128xi32>
    %c-128_i32 = arith.constant -128 : i32
    %35 = vector.broadcast %c-128_i32 : i32 to vector<16x128xi32>
    %36 = arith.andi %34, %35 : vector<16x128xi32>
    %37 = vector.broadcast %11 : vector<1x128xi32> to vector<16x128xi32>
    %38 = arith.ori %36, %37 : vector<16x128xi32>
    %cst_17 = arith.constant dense<0.000000e+00> : vector<16xf32>
    %39 = vector.multi_reduction <add>, %33, %cst_17 [1] : vector<16x128xf32> to vector<16xf32>
    %40 = vector.shape_cast %39 : vector<16xf32> to vector<16x1xf32>
    %cst_18 = arith.constant dense<-2147483648> : vector<16xi32>
    %41 = vector.multi_reduction <maxsi>, %38, %cst_18 [1] : vector<16x128xi32> to vector<16xi32>
    %42 = vector.shape_cast %41 : vector<16xi32> to vector<16x1xi32>
    %c127_i32 = arith.constant 127 : i32
    %43 = vector.broadcast %c127_i32 : i32 to vector<16x1xi32>
    %44 = arith.andi %42, %43 : vector<16x1xi32>
    %45 = vector.broadcast %11 : vector<1x128xi32> to vector<16x128xi32>
    %46 = vector.broadcast %44 : vector<16x1xi32> to vector<16x128xi32>
    %47 = arith.cmpi eq, %45, %46 : vector<16x128xi32>
    %c-2147483648_i32 = arith.constant -2147483648 : i32
    %48 = vector.broadcast %c-2147483648_i32 : i32 to vector<16x128xi32>
    %49 = arith.select %47, %48, %38 : vector<16x128xi1>, vector<16x128xi32>
    %cst_19 = arith.constant 0.000000e+00 : f32
    %50 = vector.broadcast %cst_19 : f32 to vector<16x128xf32>
    %51 = arith.select %47, %50, %33 : vector<16x128xi1>, vector<16x128xf32>
    %cst_20 = arith.constant dense<-2147483648> : vector<16xi32>
    %52 = vector.multi_reduction <maxsi>, %49, %cst_20 [1] : vector<16x128xi32> to vector<16xi32>
    %53 = vector.shape_cast %52 : vector<16xi32> to vector<16x1xi32>
    %c127_i32_21 = arith.constant 127 : i32
    %54 = vector.broadcast %c127_i32_21 : i32 to vector<16x1xi32>
    %55 = arith.andi %53, %54 : vector<16x1xi32>
    %56 = vector.broadcast %11 : vector<1x128xi32> to vector<16x128xi32>
    %57 = vector.broadcast %55 : vector<16x1xi32> to vector<16x128xi32>
    %58 = arith.cmpi eq, %56, %57 : vector<16x128xi32>
    %c-2147483648_i32_22 = arith.constant -2147483648 : i32
    %59 = vector.broadcast %c-2147483648_i32_22 : i32 to vector<16x128xi32>
    %60 = arith.select %58, %59, %49 : vector<16x128xi1>, vector<16x128xi32>
    %cst_23 = arith.constant 0.000000e+00 : f32
    %61 = vector.broadcast %cst_23 : f32 to vector<16x128xf32>
    %62 = arith.select %58, %61, %51 : vector<16x128xi1>, vector<16x128xf32>
    %cst_24 = arith.constant dense<-2147483648> : vector<16xi32>
    %63 = vector.multi_reduction <maxsi>, %60, %cst_24 [1] : vector<16x128xi32> to vector<16xi32>
    %64 = vector.shape_cast %63 : vector<16xi32> to vector<16x1xi32>
    %c127_i32_25 = arith.constant 127 : i32
    %65 = vector.broadcast %c127_i32_25 : i32 to vector<16x1xi32>
    %66 = arith.andi %64, %65 : vector<16x1xi32>
    %67 = vector.broadcast %11 : vector<1x128xi32> to vector<16x128xi32>
    %68 = vector.broadcast %66 : vector<16x1xi32> to vector<16x128xi32>
    %69 = arith.cmpi eq, %67, %68 : vector<16x128xi32>
    %c-2147483648_i32_26 = arith.constant -2147483648 : i32
    %70 = vector.broadcast %c-2147483648_i32_26 : i32 to vector<16x128xi32>
    %71 = arith.select %69, %70, %60 : vector<16x128xi1>, vector<16x128xi32>
    %cst_27 = arith.constant 0.000000e+00 : f32
    %72 = vector.broadcast %cst_27 : f32 to vector<16x128xf32>
    %73 = arith.select %69, %72, %62 : vector<16x128xi1>, vector<16x128xf32>
    %cst_28 = arith.constant dense<-2147483648> : vector<16xi32>
    %74 = vector.multi_reduction <maxsi>, %71, %cst_28 [1] : vector<16x128xi32> to vector<16xi32>
    %75 = vector.shape_cast %74 : vector<16xi32> to vector<16x1xi32>
    %c127_i32_29 = arith.constant 127 : i32
    %76 = vector.broadcast %c127_i32_29 : i32 to vector<16x1xi32>
    %77 = arith.andi %75, %76 : vector<16x1xi32>
    %78 = vector.broadcast %11 : vector<1x128xi32> to vector<16x128xi32>
    %79 = vector.broadcast %77 : vector<16x1xi32> to vector<16x128xi32>
    %80 = arith.cmpi eq, %78, %79 : vector<16x128xi32>
    %c-2147483648_i32_30 = arith.constant -2147483648 : i32
    %81 = vector.broadcast %c-2147483648_i32_30 : i32 to vector<16x128xi32>
    %82 = arith.select %80, %81, %71 : vector<16x128xi1>, vector<16x128xi32>
    %cst_31 = arith.constant 0.000000e+00 : f32
    %83 = vector.broadcast %cst_31 : f32 to vector<16x128xf32>
    %84 = arith.select %80, %83, %73 : vector<16x128xi1>, vector<16x128xf32>
    %cst_32 = arith.constant dense<0.000000e+00> : vector<16xf32>
    %85 = vector.multi_reduction <add>, %84, %cst_32 [1] : vector<16x128xf32> to vector<16xf32>
    %86 = vector.shape_cast %85 : vector<16xf32> to vector<16x1xf32>
    %cst_33 = arith.constant dense<-2147483648> : vector<16xi32>
    %87 = vector.multi_reduction <maxsi>, %82, %cst_33 [1] : vector<16x128xi32> to vector<16xi32>
    %88 = vector.shape_cast %87 : vector<16xi32> to vector<16x1xi32>
    %c127_i32_34 = arith.constant 127 : i32
    %89 = vector.broadcast %c127_i32_34 : i32 to vector<16x1xi32>
    %90 = arith.andi %88, %89 : vector<16x1xi32>
    %91 = vector.broadcast %11 : vector<1x128xi32> to vector<16x128xi32>
    %92 = vector.broadcast %90 : vector<16x1xi32> to vector<16x128xi32>
    %93 = arith.cmpi eq, %91, %92 : vector<16x128xi32>
    %c-2147483648_i32_35 = arith.constant -2147483648 : i32
    %94 = vector.broadcast %c-2147483648_i32_35 : i32 to vector<16x128xi32>
    %95 = arith.select %93, %94, %82 : vector<16x128xi1>, vector<16x128xi32>
    %cst_36 = arith.constant 0.000000e+00 : f32
    %96 = vector.broadcast %cst_36 : f32 to vector<16x128xf32>
    %97 = arith.select %93, %96, %84 : vector<16x128xi1>, vector<16x128xf32>
    %cst_37 = arith.constant dense<-2147483648> : vector<16xi32>
    %98 = vector.multi_reduction <maxsi>, %95, %cst_37 [1] : vector<16x128xi32> to vector<16xi32>
    %99 = vector.shape_cast %98 : vector<16xi32> to vector<16x1xi32>
    %c127_i32_38 = arith.constant 127 : i32
    %100 = vector.broadcast %c127_i32_38 : i32 to vector<16x1xi32>
    %101 = arith.andi %99, %100 : vector<16x1xi32>
    %102 = vector.broadcast %11 : vector<1x128xi32> to vector<16x128xi32>
    %103 = vector.broadcast %101 : vector<16x1xi32> to vector<16x128xi32>
    %104 = arith.cmpi eq, %102, %103 : vector<16x128xi32>
    %c-2147483648_i32_39 = arith.constant -2147483648 : i32
    %105 = vector.broadcast %c-2147483648_i32_39 : i32 to vector<16x128xi32>
    %106 = arith.select %104, %105, %95 : vector<16x128xi1>, vector<16x128xi32>
    %cst_40 = arith.constant 0.000000e+00 : f32
    %107 = vector.broadcast %cst_40 : f32 to vector<16x128xf32>
    %108 = arith.select %104, %107, %97 : vector<16x128xi1>, vector<16x128xf32>
    %cst_41 = arith.constant dense<0.000000e+00> : vector<16xf32>
    %109 = vector.multi_reduction <add>, %108, %cst_41 [1] : vector<16x128xf32> to vector<16xf32>
    %110 = vector.shape_cast %109 : vector<16xf32> to vector<16x1xf32>
    %cst_42 = arith.constant dense<-2147483648> : vector<16xi32>
    %111 = vector.multi_reduction <maxsi>, %106, %cst_42 [1] : vector<16x128xi32> to vector<16xi32>
    %112 = vector.shape_cast %111 : vector<16xi32> to vector<16x1xi32>
    %c127_i32_43 = arith.constant 127 : i32
    %113 = vector.broadcast %c127_i32_43 : i32 to vector<16x1xi32>
    %114 = arith.andi %112, %113 : vector<16x1xi32>
    %115 = vector.broadcast %11 : vector<1x128xi32> to vector<16x128xi32>
    %116 = vector.broadcast %114 : vector<16x1xi32> to vector<16x128xi32>
    %117 = arith.cmpi eq, %115, %116 : vector<16x128xi32>
    %c-2147483648_i32_44 = arith.constant -2147483648 : i32
    %118 = vector.broadcast %c-2147483648_i32_44 : i32 to vector<16x128xi32>
    %119 = arith.select %117, %118, %106 : vector<16x128xi1>, vector<16x128xi32>
    %cst_45 = arith.constant 0.000000e+00 : f32
    %120 = vector.broadcast %cst_45 : f32 to vector<16x128xf32>
    %121 = arith.select %117, %120, %108 : vector<16x128xi1>, vector<16x128xf32>
    %cst_46 = arith.constant dense<-2147483648> : vector<16xi32>
    %122 = vector.multi_reduction <maxsi>, %119, %cst_46 [1] : vector<16x128xi32> to vector<16xi32>
    %123 = vector.shape_cast %122 : vector<16xi32> to vector<16x1xi32>
    %c127_i32_47 = arith.constant 127 : i32
    %124 = vector.broadcast %c127_i32_47 : i32 to vector<16x1xi32>
    %125 = arith.andi %123, %124 : vector<16x1xi32>
    %126 = vector.broadcast %11 : vector<1x128xi32> to vector<16x128xi32>
    %127 = vector.broadcast %125 : vector<16x1xi32> to vector<16x128xi32>
    %128 = arith.cmpi eq, %126, %127 : vector<16x128xi32>
    %c-2147483648_i32_48 = arith.constant -2147483648 : i32
    %129 = vector.broadcast %c-2147483648_i32_48 : i32 to vector<16x128xi32>
    %130 = arith.select %128, %129, %119 : vector<16x128xi1>, vector<16x128xi32>
    %cst_49 = arith.constant 0.000000e+00 : f32
    %131 = vector.broadcast %cst_49 : f32 to vector<16x128xf32>
    %132 = arith.select %128, %131, %121 : vector<16x128xi1>, vector<16x128xf32>
    %cst_50 = arith.constant dense<0.000000e+00> : vector<16xf32>
    %133 = vector.multi_reduction <add>, %132, %cst_50 [1] : vector<16x128xf32> to vector<16xf32>
    %134 = vector.shape_cast %133 : vector<16xf32> to vector<16x1xf32>
    %cst_51 = arith.constant dense<-2147483648> : vector<16xi32>
    %135 = vector.multi_reduction <maxsi>, %130, %cst_51 [1] : vector<16x128xi32> to vector<16xi32>
    %136 = vector.shape_cast %135 : vector<16xi32> to vector<16x1xi32>
    %c127_i32_52 = arith.constant 127 : i32
    %137 = vector.broadcast %c127_i32_52 : i32 to vector<16x1xi32>
    %138 = arith.andi %136, %137 : vector<16x1xi32>
    %139 = vector.broadcast %11 : vector<1x128xi32> to vector<16x128xi32>
    %140 = vector.broadcast %138 : vector<16x1xi32> to vector<16x128xi32>
    %141 = arith.cmpi eq, %139, %140 : vector<16x128xi32>
    %c-2147483648_i32_53 = arith.constant -2147483648 : i32
    %142 = vector.broadcast %c-2147483648_i32_53 : i32 to vector<16x128xi32>
    %143 = arith.select %141, %142, %130 : vector<16x128xi1>, vector<16x128xi32>
    %cst_54 = arith.constant 0.000000e+00 : f32
    %144 = vector.broadcast %cst_54 : f32 to vector<16x128xf32>
    %145 = arith.select %141, %144, %132 : vector<16x128xi1>, vector<16x128xf32>
    %cst_55 = arith.constant dense<-2147483648> : vector<16xi32>
    %146 = vector.multi_reduction <maxsi>, %143, %cst_55 [1] : vector<16x128xi32> to vector<16xi32>
    %147 = vector.shape_cast %146 : vector<16xi32> to vector<16x1xi32>
    %c127_i32_56 = arith.constant 127 : i32
    %148 = vector.broadcast %c127_i32_56 : i32 to vector<16x1xi32>
    %149 = arith.andi %147, %148 : vector<16x1xi32>
    %150 = vector.broadcast %11 : vector<1x128xi32> to vector<16x128xi32>
    %151 = vector.broadcast %149 : vector<16x1xi32> to vector<16x128xi32>
    %152 = arith.cmpi eq, %150, %151 : vector<16x128xi32>
    %c-2147483648_i32_57 = arith.constant -2147483648 : i32
    %153 = vector.broadcast %c-2147483648_i32_57 : i32 to vector<16x128xi32>
    %154 = arith.select %152, %153, %143 : vector<16x128xi1>, vector<16x128xi32>
    %cst_58 = arith.constant 0.000000e+00 : f32
    %155 = vector.broadcast %cst_58 : f32 to vector<16x128xf32>
    %156 = arith.select %152, %155, %145 : vector<16x128xi1>, vector<16x128xf32>
    %cst_59 = arith.constant dense<-2147483648> : vector<16xi32>
    %157 = vector.multi_reduction <maxsi>, %154, %cst_59 [1] : vector<16x128xi32> to vector<16xi32>
    %158 = vector.shape_cast %157 : vector<16xi32> to vector<16x1xi32>
    %c127_i32_60 = arith.constant 127 : i32
    %159 = vector.broadcast %c127_i32_60 : i32 to vector<16x1xi32>
    %160 = arith.andi %158, %159 : vector<16x1xi32>
    %161 = vector.broadcast %11 : vector<1x128xi32> to vector<16x128xi32>
    %162 = vector.broadcast %160 : vector<16x1xi32> to vector<16x128xi32>
    %163 = arith.cmpi eq, %161, %162 : vector<16x128xi32>
    %c-2147483648_i32_61 = arith.constant -2147483648 : i32
    %164 = vector.broadcast %c-2147483648_i32_61 : i32 to vector<16x128xi32>
    %165 = arith.select %163, %164, %154 : vector<16x128xi1>, vector<16x128xi32>
    %cst_62 = arith.constant 0.000000e+00 : f32
    %166 = vector.broadcast %cst_62 : f32 to vector<16x128xf32>
    %167 = arith.select %163, %166, %156 : vector<16x128xi1>, vector<16x128xf32>
    %cst_63 = arith.constant dense<-2147483648> : vector<16xi32>
    %168 = vector.multi_reduction <maxsi>, %165, %cst_63 [1] : vector<16x128xi32> to vector<16xi32>
    %169 = vector.shape_cast %168 : vector<16xi32> to vector<16x1xi32>
    %c127_i32_64 = arith.constant 127 : i32
    %170 = vector.broadcast %c127_i32_64 : i32 to vector<16x1xi32>
    %171 = arith.andi %169, %170 : vector<16x1xi32>
    %172 = vector.broadcast %11 : vector<1x128xi32> to vector<16x128xi32>
    %173 = vector.broadcast %171 : vector<16x1xi32> to vector<16x128xi32>
    %174 = arith.cmpi eq, %172, %173 : vector<16x128xi32>
    %cst_65 = arith.constant 0.000000e+00 : f32
    %175 = vector.broadcast %cst_65 : f32 to vector<16x128xf32>
    %176 = arith.select %174, %175, %167 : vector<16x128xi1>, vector<16x128xf32>
    %cst_66 = arith.constant dense<0.000000e+00> : vector<16xf32>
    %177 = vector.multi_reduction <add>, %176, %cst_66 [1] : vector<16x128xf32> to vector<16xf32>
    %178 = vector.shape_cast %177 : vector<16xf32> to vector<16x1xf32>
    %179 = vector.extract_strided_slice %40 {offsets = [0, 0], sizes = [8, 1], strides = [1, 1]} : vector<16x1xf32> to vector<8x1xf32>
    %180 = vector.extract_strided_slice %86 {offsets = [0, 0], sizes = [8, 1], strides = [1, 1]} : vector<16x1xf32> to vector<8x1xf32>
    %181 = arith.subf %179, %180 : vector<8x1xf32>
    %182 = vector.extract_strided_slice %110 {offsets = [0, 0], sizes = [8, 1], strides = [1, 1]} : vector<16x1xf32> to vector<8x1xf32>
    %183 = vector.extract_strided_slice %40 {offsets = [8, 0], sizes = [8, 1], strides = [1, 1]} : vector<16x1xf32> to vector<8x1xf32>
    %184 = vector.extract_strided_slice %134 {offsets = [8, 0], sizes = [8, 1], strides = [1, 1]} : vector<16x1xf32> to vector<8x1xf32>
    %185 = arith.subf %183, %184 : vector<8x1xf32>
    %186 = vector.extract_strided_slice %178 {offsets = [8, 0], sizes = [8, 1], strides = [1, 1]} : vector<16x1xf32> to vector<8x1xf32>
    %187 = math.log %182 : vector<8x1xf32>
    %188 = math.log %181 : vector<8x1xf32>
    %189 = arith.subf %187, %188 : vector<8x1xf32>
    %cst_67 = arith.constant 1.200000e+01 : f32
    %190 = vector.broadcast %cst_67 : f32 to vector<8x1xf32>
    %191 = arith.addf %189, %190 : vector<8x1xf32>
    %cst_68 = arith.constant 0.000000e+00 : f32
    %192 = vector.broadcast %cst_68 : f32 to vector<8x1xf32>
    %193 = arith.maximumf %191, %192 : vector<8x1xf32>
    %194 = math.log %186 : vector<8x1xf32>
    %195 = math.log %185 : vector<8x1xf32>
    %196 = arith.subf %194, %195 : vector<8x1xf32>
    %cst_69 = arith.constant 5.000000e+00 : f32
    %197 = vector.broadcast %cst_69 : f32 to vector<8x1xf32>
    %198 = arith.addf %196, %197 : vector<8x1xf32>
    %cst_70 = arith.constant 0.000000e+00 : f32
    %199 = vector.broadcast %cst_70 : f32 to vector<8x1xf32>
    %200 = arith.maximumf %198, %199 : vector<8x1xf32>
    %201 = arith.addf %193, %200 : vector<8x1xf32>
    %202 = tpu.iota {dimensions = array<i32: 0>} : vector<8x1xi32>
    %c8_i32 = arith.constant 8 : i32
    %203 = arith.muli %arg1, %c8_i32 : i32
    %204 = vector.broadcast %203 : i32 to vector<8x1xi32>
    %205 = arith.addi %202, %204 : vector<8x1xi32>
    %c8_i32_71 = arith.constant 8 : i32
    %206 = vector.broadcast %c8_i32_71 : i32 to vector<8x1xi32>
    %207 = arith.cmpi slt, %205, %206 : vector<8x1xi32>
    %cst_72 = arith.constant 0.000000e+00 : f32
    %208 = vector.broadcast %cst_72 : f32 to vector<8x1xf32>
    %209 = arith.select %207, %201, %208 : vector<8x1xi1>, vector<8x1xf32>
    %cst_73 = arith.constant dense<0.000000e+00> : vector<1xf32>
    %210 = vector.multi_reduction <add>, %209, %cst_73 [0] : vector<8x1xf32> to vector<1xf32>
    %211 = vector.shape_cast %210 : vector<1xf32> to vector<1x1xf32>
    %c0_74 = arith.constant 0 : index
    %c0_75 = arith.constant 0 : index
    %c0_76 = arith.constant 0 : index
    %c0_77 = arith.constant 0 : index
    %212 = vector.load %arg7[%c0_74, %c0_75, %c0_76, %c0_77] : memref<1x1x1x1xf32, #tpu.memory_space<vmem>>, vector<1x1x1x1xf32>
    %213 = vector.shape_cast %212 : vector<1x1x1x1xf32> to vector<1x1xf32>
    %214 = vector.shape_cast %211 : vector<1x1xf32> to vector<1x1x1x1xf32>
    tpu.vector_store %arg7[%c0_74, %c0_75, %c0_76, %c0_77], %214 {strides = array<i32>} : memref<1x1x1x1xf32, #tpu.memory_space<vmem>>, vector<1x1x1x1xf32>,
    return
  }
  func.func @transform_0(%arg0: i32, %arg1: i32) -> (i32, i32) {
    %c0_i32 = arith.constant 0 : i32
    %c0_i32_0 = arith.constant 0 : i32
    return %arg1, %c0_i32 : i32, i32
  }
  func.func @transform_1(%arg0: i32, %arg1: i32) -> (i32, i32) {
    %c0_i32 = arith.constant 0 : i32
    %c0_i32_0 = arith.constant 0 : i32
    %c0_i32_1 = arith.constant 0 : i32
    return %c0_i32, %c0_i32_0 : i32, i32
  }
  func.func @transform_2(%arg0: i32, %arg1: i32) -> (i32, i32, i32) {
    %c0_i32 = arith.constant 0 : i32
    %c0_i32_0 = arith.constant 0 : i32
    %c0_i32_1 = arith.constant 0 : i32
    return %arg0, %c0_i32, %c0_i32_0 : i32, i32, i32
  }
  func.func @transform_3(%arg0: i32, %arg1: i32) -> (i32, i32, i32) {
    %c0_i32 = arith.constant 0 : i32
    %c0_i32_0 = arith.constant 0 : i32
    return %arg0, %arg1, %c0_i32 : i32, i32, i32
  }
  func.func @transform_4(%arg0: i32, %arg1: i32) -> (i32, i32, i32) {
    %c0_i32 = arith.constant 0 : i32
    %c0_i32_0 = arith.constant 0 : i32
    %c0_i32_1 = arith.constant 0 : i32
    return %arg0, %c0_i32, %c0_i32_0 : i32, i32, i32
  }
  func.func @transform_5(%arg0: i32, %arg1: i32) -> (i32, i32, i32, i32) {
    %c0_i32 = arith.constant 0 : i32
    %c0_i32_0 = arith.constant 0 : i32
    %c0_i32_1 = arith.constant 0 : i32
    return %arg0, %arg1, %c0_i32, %c0_i32_0 : i32, i32, i32, i32
  }
}

</mosaic_0001>

<llo_original>
// kernel: tpu_custom_call.1
$region0: #{tpu_custom_call.1}
  #allocation0 [shape = 'u32[]', space=smem, size = 0x4, offset = 0x4, fixed_abs, tag = 'smem constant byte address 0x4 - core index']
  #allocation1 [shape = 'u32[72,128]{1,0:T(1,128)}', space=vmem, size = 0x9000, scoped, tag = 'internal scratch']
  %s0 = inlined_call_operand.vmem [shape: s32[8,1], index: 0, kind: input, shape index: {}]
  %s1 = inlined_call_operand.vmem [shape: s32[1,128], index: 1, kind: input, shape index: {}]
  %s2 = inlined_call_operand.vmem [shape: f32[2,1,128], index: 2, kind: input, shape index: {}]
  %s3 = inlined_call_operand.vmem [shape: bf16[2,8,128], index: 3, kind: input, shape index: {}]
  %s4 = inlined_call_operand.hbm [shape: bf16[2,128,128], index: 4, kind: input, shape index: {}]
  %s5 = inlined_call_operand.vmem [shape: f32[2,1,1,1], index: 5, kind: output, shape index: {}]
  %s6 = sld [smem:[#allocation0]]
  $region57: #{tpu_custom_call.1} parent=0
    _
  %s8 = ssub.s32 1, %s6
  %s9 = scalar_select 0, %s8, %s6
  $region1: #{tpu_custom_call.1} parent=0
    #allocation2 [shape = 'u8[65536]{0}', space=vmem, size = 0x10000, scoped, tag = 'input window, operand 4']
    #allocation3 [shape = 's32[2]{0}', space=sflag, size = 0x8, scoped, tag = 'scoped memory for tpu_custom_call.1']
    %10 = vsyncpa [#allocation3], 0
    %s11 = scalar_lea.sflag [#allocation3], 1
    %12 = vsyncpa %s11, 0
    loop: start=0, step=1, limit=4
    $region2: #{tpu_custom_call.1} parent=1 // loop_pre_header
      _
    $region3: #{tpu_custom_call.1} parent=1 // loop_header
      %s14 = sphi 0, %s18
      %p15 = scmp.ge.s32.totalorder %s14, 4
      %s21 = sphi 0, %s33
      %s22 = sphi 0, %s29
      %s23 = sphi 0, %s21
      %s24 = sphi 0, %s22
      %s25 = sphi 0, %s23
      %s26 = sphi 0, %s24
      %s36 = sphi 0, %s38
      %s39 = sphi 0, %s36
      %s40 = sphi 0, %s39
      %s56 = sphi 0, %s40
      %s60 = sphi 0, %s60
      %s62 = sphi 0, %s60
      %s63 = sphi 0, %s62
      %s77 = sphi 0, %s63
      %s83 = sphi 0, %s85
      %s86 = sphi 0, %s83
      %s87 = sphi 0, %s86
      %s103 = sphi 0, %s87
      %s111 = sphi 0, %s113
      %s114 = sphi 0, %s111
      %s115 = sphi 0, %s114
      %s131 = sphi 0, %s115
      %s137 = sphi 0, %s139
      %s140 = sphi 0, %s137
      %s141 = sphi 0, %s140
      %s157 = sphi 0, %s141
      %s165 = sphi 0, %s167
      %s168 = sphi 0, %s165
      %s169 = sphi 0, %s168
      %s185 = sphi 0, %s169
    $region4: #{tpu_custom_call.1} parent=1 // loop_header_branch
      %17 = sbr.rel (%p15) target = $region8
    $region5: #{tpu_custom_call.1} parent=1 // loop_body
      %s19 = ssub.s32 %s14, 1
      %s20 = ssub.s32 %s14, 2
      %s27 = sadd.s32 1, %s22
      %p28 = scmp.ge.s32.totalorder %s27, 1
      %s29 = scalar_select %p28, 0, %s27
      %s30 = sadd.s32 1, %s21
      %s31 = scalar_select %p28, %s30, %s21
      %p32 = scmp.ge.s32.totalorder %s31, 2
      %s33 = scalar_select %p32, 0, %s31
      %s34 = ssub.s32 %s22, %s29
      %p35 = scmp.eq.s32.totalorder %s34, 0
      %s37 = sadd.s32 %s36, 1
      %s38 = scalar_select %p35, %s36, %s37
      %p41 = pneg %p35
      %p42 = scmp.eq.s32.totalorder %s14, 1
      %p43 = por %p41, %p42
      %p44 = scmp.ne.s32.totalorder %s36, %s39
      %p45 = scmp.eq.s32.totalorder %s14, 0
      %p46 = por %p44, %p45
      %p47 = scmp.ne.s32.totalorder %s36, %s39
      %p48 = scmp.eq.s32.totalorder %s19, 1
      %p49 = por %p47, %p48
      %p50 = scmp.ne.s32.totalorder %s39, %s40
      %p51 = scmp.eq.s32.totalorder %s19, 0
      %p52 = por %p50, %p51
      %p53 = scmp.ne.s32.totalorder %s39, %s40
      %p54 = scmp.eq.s32.totalorder %s20, 1
      %p55 = por %p53, %p54
      %p57 = scmp.ne.s32.totalorder %s40, %s56
      %p58 = scmp.eq.s32.totalorder %s20, 0
      %p59 = por %p57, %p58
      %s61 = sadd.s32 %s60, 1
      %p64 = scmp.eq.s32.totalorder %s14, 1
      %p65 = scmp.ne.s32.totalorder %s60, %s62
      %p66 = scmp.eq.s32.totalorder %s14, 0
      %p67 = por %p65, %p66
      %p68 = scmp.ne.s32.totalorder %s60, %s62
      %p69 = scmp.eq.s32.totalorder %s19, 1
      %p70 = por %p68, %p69
      %p71 = scmp.ne.s32.totalorder %s62, %s63
      %p72 = scmp.eq.s32.totalorder %s19, 0
      %p73 = por %p71, %p72
      %p74 = scmp.ne.s32.totalorder %s62, %s63
      %p75 = scmp.eq.s32.totalorder %s20, 1
      %p76 = por %p74, %p75
      %p78 = scmp.ne.s32.totalorder %s63, %s77
      %p79 = scmp.eq.s32.totalorder %s20, 0
      %p80 = por %p78, %p79
      %s81 = ssub.s32 %s21, %s33
      %p82 = scmp.eq.s32.totalorder %s81, 0
      %s84 = sadd.s32 %s83, 1
      %s85 = scalar_select %p82, %s83, %s84
      %p88 = pneg %p82
      %p89 = scmp.eq.s32.totalorder %s14, 1
      %p90 = por %p88, %p89
      %p91 = scmp.ne.s32.totalorder %s83, %s86
      %p92 = scmp.eq.s32.totalorder %s14, 0
      %p93 = por %p91, %p92
      %p94 = scmp.ne.s32.totalorder %s83, %s86
      %p95 = scmp.eq.s32.totalorder %s19, 1
      %p96 = por %p94, %p95
      %p97 = scmp.ne.s32.totalorder %s86, %s87
      %p98 = scmp.eq.s32.totalorder %s19, 0
      %p99 = por %p97, %p98
      %p100 = scmp.ne.s32.totalorder %s86, %s87
      %p101 = scmp.eq.s32.totalorder %s20, 1
      %p102 = por %p100, %p101
      %p104 = scmp.ne.s32.totalorder %s87, %s103
      %p105 = scmp.eq.s32.totalorder %s20, 0
      %p106 = por %p104, %p105
      %s107 = ssub.s32 %s21, %s33
      %s108 = ssub.s32 %s22, %s29
      %s109 = sor.u32 %s107, %s108
      %p110 = scmp.eq.s32.totalorder %s109, 0
      %s112 = sadd.s32 %s111, 1
      %s113 = scalar_select %p110, %s111, %s112
      %p116 = pneg %p110
      %p117 = scmp.eq.s32.totalorder %s14, 1
      %p118 = por %p116, %p117
      %p119 = scmp.ne.s32.totalorder %s111, %s114
      %p120 = scmp.eq.s32.totalorder %s14, 0
      %p121 = por %p119, %p120
      %p122 = scmp.ne.s32.totalorder %s111, %s114
      %p123 = scmp.eq.s32.totalorder %s19, 1
      %p124 = por %p122, %p123
      %p125 = scmp.ne.s32.totalorder %s114, %s115
      %p126 = scmp.eq.s32.totalorder %s19, 0
      %p127 = por %p125, %p126
      %p128 = scmp.ne.s32.totalorder %s114, %s115
      %p129 = scmp.eq.s32.totalorder %s20, 1
      %p130 = por %p128, %p129
      %p132 = scmp.ne.s32.totalorder %s115, %s131
      %p133 = scmp.eq.s32.totalorder %s20, 0
      %p134 = por %p132, %p133
      %s135 = ssub.s32 %s21, %s33
      %p136 = scmp.eq.s32.totalorder %s135, 0
      %s138 = sadd.s32 %s137, 1
      %s139 = scalar_select %p136, %s137, %s138
      %p142 = pneg %p136
      %p143 = scmp.eq.s32.totalorder %s14, 1
      %p144 = por %p142, %p143
      %p145 = scmp.ne.s32.totalorder %s137, %s140
      %p146 = scmp.eq.s32.totalorder %s14, 0
      %p147 = por %p145, %p146
      %p148 = scmp.ne.s32.totalorder %s137, %s140
      %p149 = scmp.eq.s32.totalorder %s19, 1
      %p150 = por %p148, %p149
      %p151 = scmp.ne.s32.totalorder %s140, %s141
      %p152 = scmp.eq.s32.totalorder %s19, 0
      %p153 = por %p151, %p152
      %p154 = scmp.ne.s32.totalorder %s140, %s141
      %p155 = scmp.eq.s32.totalorder %s20, 1
      %p156 = por %p154, %p155
      %p158 = scmp.ne.s32.totalorder %s141, %s157
      %p159 = scmp.eq.s32.totalorder %s20, 0
      %p160 = por %p158, %p159
      %s161 = ssub.s32 %s21, %s33
      %s162 = ssub.s32 %s22, %s29
      %s163 = sor.u32 %s161, %s162
      %p164 = scmp.eq.s32.totalorder %s163, 0
      %s166 = sadd.s32 %s165, 1
      %s167 = scalar_select %p164, %s165, %s166
      %p170 = pneg %p164
      %p171 = scmp.eq.s32.totalorder %s14, 1
      %p172 = por %p170, %p171
      %p173 = scmp.ne.s32.totalorder %s165, %s168
      %p174 = scmp.eq.s32.totalorder %s14, 0
      %p175 = por %p173, %p174
      %p176 = scmp.ne.s32.totalorder %s165, %s168
      %p177 = scmp.eq.s32.totalorder %s19, 1
      %p178 = por %p176, %p177
      %p179 = scmp.ne.s32.totalorder %s168, %s169
      %p180 = scmp.eq.s32.totalorder %s19, 0
      %p181 = por %p179, %p180
      %p182 = scmp.ne.s32.totalorder %s168, %s169
      %p183 = scmp.eq.s32.totalorder %s20, 1
      %p184 = por %p182, %p183
      %p186 = scmp.ne.s32.totalorder %s169, %s185
      %p187 = scmp.eq.s32.totalorder %s20, 0
      %p188 = por %p186, %p187
      %p189 = scmp.le.s32.totalorder 1, %s14
      %p190 = scmp.lt.s32.totalorder %s14, 3
      %p191 = pnand %p189, %p190
      %p192 = pneg %p191
      // Predicated region
      $region9: #{tpu_custom_call.1} parent=5 // pred_check
        _
      $region10: #{tpu_custom_call.1} parent=5 // pred_check_branch
        %194 = sbr.rel (%p191) target = $region12
      $region11: #{tpu_custom_call.1} parent=5 // pred_region
        %s195 = ssub.s32 %s14, 1
        // Predicated region
        $region13: #{tpu_custom_call.1} parent=11 // pred_check
          %p196 = pneg %p52
        $region14: #{tpu_custom_call.1} parent=11 // pred_check_branch
          %198 = sbr.rel (%p196) target = $region16
        $region15: #{tpu_custom_call.1} parent=11 // pred_region
          %p199 = scmp.lt.s32.totalorder %s24, 0
          %s200 = scalar_select %p199, %s24, 0
          %s201 = smul.addr %s200, 8
          %s202 = scalar_lea.vmem %s0, %s201
        $region16: #{tpu_custom_call.1} parent=11 // pred_fallthru
          _
        // Predicated region
        $region17: #{tpu_custom_call.1} parent=11 // pred_check
          %p203 = pneg %p73
        $region18: #{tpu_custom_call.1} parent=11 // pred_check_branch
          %205 = sbr.rel (%p203) target = $region20
        $region19: #{tpu_custom_call.1} parent=11 // pred_region
          _
        $region20: #{tpu_custom_call.1} parent=11 // pred_fallthru
          _
      $region12: #{tpu_custom_call.1} parent=5 // pred_fallthru
        _
      %p206 = scmp.lt.s32.totalorder %s14, 2
      // Predicated region
      $region21: #{tpu_custom_call.1} parent=5 // pred_check
        %p207 = pneg %p206
      $region22: #{tpu_custom_call.1} parent=5 // pred_check_branch
        %209 = sbr.rel (%p207) target = $region24
      $region23: #{tpu_custom_call.1} parent=5 // pred_region
        // Predicated region
        $region25: #{tpu_custom_call.1} parent=23 // pred_check
          %p210 = pneg %p93
        $region26: #{tpu_custom_call.1} parent=23 // pred_check_branch
          %212 = sbr.rel (%p210) target = $region28
        $region27: #{tpu_custom_call.1} parent=23 // pred_region
          %p213 = scmp.lt.s32.totalorder %s21, 1
          %s214 = scalar_select %p213, %s21, 1
          %s215 = scalar_lea.vmem %s2, %s214
        $region28: #{tpu_custom_call.1} parent=23 // pred_fallthru
          _
        // Predicated region
        $region29: #{tpu_custom_call.1} parent=23 // pred_check
          %p216 = pneg %p121
        $region30: #{tpu_custom_call.1} parent=23 // pred_check_branch
          %218 = sbr.rel (%p216) target = $region32
        $region31: #{tpu_custom_call.1} parent=23 // pred_region
          %p219 = scmp.lt.s32.totalorder %s21, 1
          %s220 = scalar_select %p219, %s21, 1
          %p221 = scmp.lt.s32.totalorder %s22, 0
          %s222 = scalar_select %p221, %s22, 0
          %s223 = sadd.s32 %s222, %s220
          %s224 = smul.addr %s223, 4
          %s225 = scalar_lea.vmem %s3, %s224
        $region32: #{tpu_custom_call.1} parent=23 // pred_fallthru
          _
        // Predicated region
        $region33: #{tpu_custom_call.1} parent=23 // pred_check
          %p226 = pneg %p147
        $region34: #{tpu_custom_call.1} parent=23 // pred_check_branch
          %228 = sbr.rel (%p226) target = $region36
        $region35: #{tpu_custom_call.1} parent=23 // pred_region
          %s229 = sand.u32 %s137, 1
          %s230 = scalar_lea.sflag [#allocation3], %s229
          %s231 = sand.u32 %s137, 1
          %s232 = smul.addr %s231, 64
          %s233 = scalar_lea.vmem [#allocation2], %s232
          %235 = vsyncadd %s230, 0
          %s236 = smul.addr %s21, 16
          %s237 = smul.addr %s236, 4
          %s238 = scalar_lea.hbm %s4, %s237
          %s239 = sshll.u32 %s238, 4
          %s240 = int_to_ptr.hbm [resolvable:$true] %s239
          %s241 = sshll.u32 %s233, 4
          %s242 = int_to_ptr.vmem [resolvable:$true] %s241
          %247 = dma.hbm_to_vmem [thread:$0]  %s240, 1024, %s242, %s230, 64, 64, 4
        $region36: #{tpu_custom_call.1} parent=23 // pred_fallthru
          _
      $region24: #{tpu_custom_call.1} parent=5 // pred_fallthru
        _
      %p248 = scmp.le.s32.totalorder 1, %s14
      %p249 = scmp.lt.s32.totalorder %s14, 3
      %p250 = pnand %p248, %p249
      %p251 = pneg %p250
      // Predicated region
      $region37: #{tpu_custom_call.1} parent=5 // pred_check
        _
      $region38: #{tpu_custom_call.1} parent=5 // pred_check_branch
        %253 = sbr.rel (%p250) target = $region40
      $region39: #{tpu_custom_call.1} parent=5 // pred_region
        %s254 = ssub.s32 %s14, 1
        %s255 = sand.u32 %s140, 1
        %s256 = scalar_lea.sflag [#allocation3], %s255
        %s257 = sand.u32 %s140, 1
        %s258 = smul.addr %s257, 64
        %s259 = scalar_lea.vmem [#allocation2], %s258
        // Predicated region
        $region41: #{tpu_custom_call.1} parent=39 // pred_check
          %p260 = pneg %p153
        $region42: #{tpu_custom_call.1} parent=39 // pred_check_branch
          %262 = sbr.rel (%p260) target = $region44
        $region43: #{tpu_custom_call.1} parent=39 // pred_region
          %264 = dma.done %s256, 1024
        $region44: #{tpu_custom_call.1} parent=39 // pred_fallthru
          _
        %p265 = scmp.lt.s32.totalorder %s24, 0
        %s266 = scalar_select %p265, %s24, 0
        %s267 = smul.addr %s266, 8
        %s268 = scalar_lea.vmem %s0, %s267
        %p269 = pneg %p52
        %p270 = pneg %p49
        %p271 = pneg %p73
        %p272 = pneg %p70
        %p273 = scmp.lt.s32.totalorder %s23, 1
        %s274 = scalar_select %p273, %s23, 1
        %s275 = scalar_lea.vmem %s2, %s274
        %p276 = pneg %p99
        %p277 = pneg %p96
        %p278 = scmp.lt.s32.totalorder %s23, 1
        %s279 = scalar_select %p278, %s23, 1
        %p280 = scmp.lt.s32.totalorder %s24, 0
        %s281 = scalar_select %p280, %s24, 0
        %s282 = sadd.s32 %s281, %s279
        %s283 = smul.addr %s282, 4
        %s284 = scalar_lea.vmem %s3, %s283
        %p285 = pneg %p127
        %p286 = pneg %p124
        %s287 = sand.u32 %s140, 1
        %s288 = scalar_lea.sflag [#allocation3], %s287
        %s289 = sand.u32 %s140, 1
        %s290 = smul.addr %s289, 64
        %s291 = scalar_lea.vmem [#allocation2], %s290
        %p292 = pneg %p153
        %p293 = pneg %p150
        %p294 = pneg %p181
        %p295 = pneg %p178
        %p296 = scmp.lt.s32.totalorder %s23, 1
        %s297 = scalar_select %p296, %s23, 1
        %p298 = scmp.lt.s32.totalorder %s24, 0
        %s299 = scalar_select %p298, %s24, 0
        %s300 = sadd.s32 %s299, %s297
        %s301 = scalar_lea.vmem %s5, %s300
        %p302 = scmp.lt.s32.totalorder %s24, 0
        %s303 = scalar_select %p302, %s24, 0
        %s304 = smul.addr %s303, 8
        %s305 = scalar_lea.vmem %s0, %s304
        %p306 = scmp.lt.s32.totalorder %s23, 1
        %s307 = scalar_select %p306, %s23, 1
        %s308 = scalar_lea.vmem %s2, %s307
        %p309 = scmp.lt.s32.totalorder %s23, 1
        %s310 = scalar_select %p309, %s23, 1
        %p311 = scmp.lt.s32.totalorder %s24, 0
        %s312 = scalar_select %p311, %s24, 0
        %s313 = sadd.s32 %s312, %s310
        %s314 = smul.addr %s313, 4
        %s315 = scalar_lea.vmem %s3, %s314
        %p316 = scmp.lt.s32.totalorder %s23, 1
        %s317 = scalar_select %p316, %s23, 1
        %p318 = scmp.lt.s32.totalorder %s24, 0
        %s319 = scalar_select %p318, %s24, 0
        %s320 = sadd.s32 %s319, %s317
        %s321 = scalar_lea.vmem %s5, %s320
        %v322 = vld [vmem:[%s315] sm:$0xf]
        %v323 = vld [vmem:[%s259] sm:$0xf]
        %v324 = vld [vmem:[%s259 + $0x4] sm:$0xf]
        %v325 = vld [vmem:[%s259 + $0x8] sm:$0xf]
        %v326 = vld [vmem:[%s259 + $0xc] sm:$0xf]
        %v327 = vld [vmem:[%s259 + $0x10] sm:$0xf]
        %v328 = vld [vmem:[%s259 + $0x14] sm:$0xf]
        %v329 = vld [vmem:[%s259 + $0x18] sm:$0xf]
        %v330 = vld [vmem:[%s259 + $0x1c] sm:$0xf]
        %v331 = vld [vmem:[%s259 + $0x20] sm:$0xf]
        %v332 = vld [vmem:[%s259 + $0x24] sm:$0xf]
        %v333 = vld [vmem:[%s259 + $0x28] sm:$0xf]
        %v334 = vld [vmem:[%s259 + $0x2c] sm:$0xf]
        %v335 = vld [vmem:[%s259 + $0x30] sm:$0xf]
        %v336 = vld [vmem:[%s259 + $0x34] sm:$0xf]
        %v337 = vld [vmem:[%s259 + $0x38] sm:$0xf]
        %v338 = vld [vmem:[%s259 + $0x3c] sm:$0xf]
        %v355 = vunpack.c.l.b16 %v323
        %v356 = vunpack.c.l.b16 %v324
        %v357 = vunpack.c.l.b16 %v325
        %v358 = vunpack.c.l.b16 %v326
        %v359 = vunpack.c.l.b16 %v327
        %v360 = vunpack.c.l.b16 %v328
        %v361 = vunpack.c.l.b16 %v329
        %v362 = vunpack.c.l.b16 %v330
        %v363 = vunpack.c.l.b16 %v331
        %v364 = vunpack.c.l.b16 %v332
        %v365 = vunpack.c.l.b16 %v333
        %v366 = vunpack.c.l.b16 %v334
        %v367 = vunpack.c.l.b16 %v335
        %v368 = vunpack.c.l.b16 %v336
        %v369 = vunpack.c.l.b16 %v337
        %v370 = vunpack.c.l.b16 %v338
        %v371 = vpack.c.b16 %v356, %v355
        %v372 = vpack.c.b16 %v358, %v357
        %v373 = vpack.c.b16 %v360, %v359
        %v374 = vpack.c.b16 %v362, %v361
        %v375 = vpack.c.b16 %v364, %v363
        %v376 = vpack.c.b16 %v366, %v365
        %v377 = vpack.c.b16 %v368, %v367
        %v378 = vpack.c.b16 %v370, %v369
        %387 = vmatpush.bf16.xpose.msra.mxu0 %v378
        %388 = vmatpush.bf16.xpose.msra.mxu0 %v377
        %389 = vmatpush.bf16.xpose.msra.mxu0 %v376
        %390 = vmatpush.bf16.xpose.msra.mxu0 %v375
        %391 = vmatpush.bf16.xpose.msra.mxu0 %v374
        %392 = vmatpush.bf16.xpose.msra.mxu0 %v373
        %393 = vmatpush.bf16.xpose.msra.mxu0 %v372
        %394 = vmatpush.bf16.xpose.msra.mxu0 %v371
        %395 = vmatmul.bf16.gmra.mxu0 %v322
        %v396 = vpop.f32.mrf.mxu0
        %v397 = vadd.f32 0.0, %v396
        %v398 = vpop.f32.mrf.mxu0
        %399 = vdwg.mxu0
        %v400 = vld [vmem:[%s308] sm:$0x1]
        %v401 = vmul.f32 %v397, 2.0
        %v403 = vperm.slane %v400, 0
        %v405 = vsub.f32 %v403, %v401
        %v406 = vlaneseq
        %v407 = vand.u32 %v406, 127
        %vm408 = vcmp.lt.s32.totalorder %v407, 64
        %v409 = vsel %vm408, 1, 0
        %vm410 = vcmp.eq.s32.totalorder %v409, 1
        %v411 = vsel %vm410, %v405, inf
        %412 = vmin.xlane.f32.xlu0 %v411
        %v413 = vpop.xlane.xlu0 %412
        %v414 = vsub.f32 %v411, %v413
        %v415 = vmul.f32 %v414, -15.0
        %v416 = vmul.f32 %v415, 1.442695
        %v417 = vpow.pop %v416
        %v418 = vld [vmem:[%s305] sm:$0xff]
        %v419 = vld [vmem:[%s1] sm:$0x1]
        %420 = vset.pattern.permute.xlu0 0
        %421 = vperm.xlu0 %420, %v418
        %v422 = vpop.permute.xlu0 %421
        %v423 = vperm.slane %v419, 0
        %vm424 = vcmp.eq.s32.totalorder %v422, %v423
        %v425 = vsel %vm424, %v417, 0.0
        %v426 = vsub.f32 %v417, %v425
        %v429 = vand.u32 %v425, 4294967168
        %v430 = vand.u32 %v426, 4294967168
        %v431 = vor.u32 %v429, %v407
        %v432 = vor.u32 %v430, %v407
        %433 = vadd.xlane.f32.xlu0 %v425
        %v434 = vpop.xlane.xlu0 %433
        %435 = vadd.xlane.f32.xlu0 %v426
        %v436 = vpop.xlane.xlu0 %435
        %v437 = vand.u32 %v431, 65535
        %v438 = vshra.s32 %v431, 16
        %v439 = vcvt.s32.f32 %v437
        %v440 = vcvt.s32.f32 %v438
        %441 = vmax.xlane.f32.xlu0 %v440
        %v442 = vpop.xlane.xlu0 %441
        %vm443 = vcmp.eq.f32.partialorder %v440, %v442
        %v444 = vsel %vm443, %v439, -inf
        %445 = vmax.xlane.f32.xlu0 %v444
        %v446 = vpop.xlane.xlu0 %445
        %v447 = vcvt.f32.s32 %v446
        %v448 = vcvt.f32.s32 %v442
        %v449 = vshll.u32 %v448, 16
        %v450 = vadd.s32 %v449, %v447
        %v451 = vand.u32 %v432, 65535
        %v452 = vshra.s32 %v432, 16
        %v453 = vcvt.s32.f32 %v451
        %v454 = vcvt.s32.f32 %v452
        %455 = vmax.xlane.f32.xlu0 %v454
        %v456 = vpop.xlane.xlu0 %455
        %vm457 = vcmp.eq.f32.partialorder %v454, %v456
        %v458 = vsel %vm457, %v453, -inf
        %459 = vmax.xlane.f32.xlu0 %v458
        %v460 = vpop.xlane.xlu0 %459
        %v461 = vcvt.f32.s32 %v460
        %v462 = vcvt.f32.s32 %v456
        %v463 = vshll.u32 %v462, 16
        %v464 = vadd.s32 %v463, %v461
        %v465 = vand.u32 %v450, 127
        %v466 = vand.u32 %v464, 127
        %vm467 = vcmp.eq.s32.totalorder %v407, %v465
        %vm468 = vcmp.eq.s32.totalorder %v407, %v466
        %v469 = vsel %vm467, 2147483648, %v431
        %v470 = vsel %vm468, 2147483648, %v432
        %v471 = vsel %vm467, 0.0, %v425
        %v472 = vsel %vm468, 0.0, %v426
        %v473 = vand.u32 %v469, 65535
        %v474 = vshra.s32 %v469, 16
        %v475 = vcvt.s32.f32 %v473
        %v476 = vcvt.s32.f32 %v474
        %477 = vmax.xlane.f32.xlu0 %v476
        %v478 = vpop.xlane.xlu0 %477
        %vm479 = vcmp.eq.f32.partialorder %v476, %v478
        %v480 = vsel %vm479, %v475, -inf
        %481 = vmax.xlane.f32.xlu0 %v480
        %v482 = vpop.xlane.xlu0 %481
        %v483 = vcvt.f32.s32 %v482
        %v484 = vcvt.f32.s32 %v478
        %v485 = vshll.u32 %v484, 16
        %v486 = vadd.s32 %v485, %v483
        %v487 = vand.u32 %v470, 65535
        %v488 = vshra.s32 %v470, 16
        %v489 = vcvt.s32.f32 %v487
        %v490 = vcvt.s32.f32 %v488
        %491 = vmax.xlane.f32.xlu0 %v490
        %v492 = vpop.xlane.xlu0 %491
        %vm493 = vcmp.eq.f32.partialorder %v490, %v492
        %v494 = vsel %vm493, %v489, -inf
        %495 = vmax.xlane.f32.xlu0 %v494
        %v496 = vpop.xlane.xlu0 %495
        %v497 = vcvt.f32.s32 %v496
        %v498 = vcvt.f32.s32 %v492
        %v499 = vshll.u32 %v498, 16
        %v500 = vadd.s32 %v499, %v497
        %v501 = vand.u32 %v486, 127
        %v502 = vand.u32 %v500, 127
        %vm503 = vcmp.eq.s32.totalorder %v407, %v501
        %vm504 = vcmp.eq.s32.totalorder %v407, %v502
        %v505 = vsel %vm503, 2147483648, %v469
        %v506 = vsel %vm504, 2147483648, %v470
        %v507 = vsel %vm503, 0.0, %v471
        %v508 = vsel %vm504, 0.0, %v472
        %v509 = vand.u32 %v505, 65535
        %v510 = vshra.s32 %v505, 16
        %v511 = vcvt.s32.f32 %v509
        %v512 = vcvt.s32.f32 %v510
        %513 = vmax.xlane.f32.xlu0 %v512
        %v514 = vpop.xlane.xlu0 %513
        %vm515 = vcmp.eq.f32.partialorder %v512, %v514
        %v516 = vsel %vm515, %v511, -inf
        %517 = vmax.xlane.f32.xlu0 %v516
        %v518 = vpop.xlane.xlu0 %517
        %v519 = vcvt.f32.s32 %v518
        %v520 = vcvt.f32.s32 %v514
        %v521 = vshll.u32 %v520, 16
        %v522 = vadd.s32 %v521, %v519
        %v523 = vand.u32 %v506, 65535
        %v524 = vshra.s32 %v506, 16
        %v525 = vcvt.s32.f32 %v523
        %v526 = vcvt.s32.f32 %v524
        %527 = vmax.xlane.f32.xlu0 %v526
        %v528 = vpop.xlane.xlu0 %527
        %vm529 = vcmp.eq.f32.partialorder %v526, %v528
        %v530 = vsel %vm529, %v525, -inf
        %531 = vmax.xlane.f32.xlu0 %v530
        %v532 = vpop.xlane.xlu0 %531
        %v533 = vcvt.f32.s32 %v532
        %v534 = vcvt.f32.s32 %v528
        %v535 = vshll.u32 %v534, 16
        %v536 = vadd.s32 %v535, %v533
        %v537 = vand.u32 %v522, 127
        %v538 = vand.u32 %v536, 127
        %vm539 = vcmp.eq.s32.totalorder %v407, %v537
        %vm540 = vcmp.eq.s32.totalorder %v407, %v538
        %v541 = vsel %vm539, 2147483648, %v505
        %v542 = vsel %vm540, 2147483648, %v506
        %v543 = vsel %vm539, 0.0, %v507
        %v544 = vsel %vm540, 0.0, %v508
        %v545 = vand.u32 %v541, 65535
        %v546 = vshra.s32 %v541, 16
        %v547 = vcvt.s32.f32 %v545
        %v548 = vcvt.s32.f32 %v546
        %549 = vmax.xlane.f32.xlu0 %v548
        %v550 = vpop.xlane.xlu0 %549
        %vm551 = vcmp.eq.f32.partialorder %v548, %v550
        %v552 = vsel %vm551, %v547, -inf
        %553 = vmax.xlane.f32.xlu0 %v552
        %v554 = vpop.xlane.xlu0 %553
        %v555 = vcvt.f32.s32 %v554
        %v556 = vcvt.f32.s32 %v550
        %v557 = vshll.u32 %v556, 16
        %v558 = vadd.s32 %v557, %v555
        %v559 = vand.u32 %v542, 65535
        %v560 = vshra.s32 %v542, 16
        %v561 = vcvt.s32.f32 %v559
        %v562 = vcvt.s32.f32 %v560
        %563 = vmax.xlane.f32.xlu0 %v562
        %v564 = vpop.xlane.xlu0 %563
        %vm565 = vcmp.eq.f32.partialorder %v562, %v564
        %v566 = vsel %vm565, %v561, -inf
        %567 = vmax.xlane.f32.xlu0 %v566
        %v568 = vpop.xlane.xlu0 %567
        %v569 = vcvt.f32.s32 %v568
        %v570 = vcvt.f32.s32 %v564
        %v571 = vshll.u32 %v570, 16
        %v572 = vadd.s32 %v571, %v569
        %v573 = vand.u32 %v558, 127
        %v574 = vand.u32 %v572, 127
        %vm575 = vcmp.eq.s32.totalorder %v407, %v573
        %vm576 = vcmp.eq.s32.totalorder %v407, %v574
        %v577 = vsel %vm575, 2147483648, %v541
        %v578 = vsel %vm576, 2147483648, %v542
        %v579 = vsel %vm575, 0.0, %v543
        %v580 = vsel %vm576, 0.0, %v544
        %581 = vadd.xlane.f32.xlu0 %v579
        %v582 = vpop.xlane.xlu0 %581
        %v583 = vand.u32 %v577, 65535
        %v584 = vshra.s32 %v577, 16
        %v585 = vcvt.s32.f32 %v583
        %v586 = vcvt.s32.f32 %v584
        %587 = vmax.xlane.f32.xlu0 %v586
        %v588 = vpop.xlane.xlu0 %587
        %vm589 = vcmp.eq.f32.partialorder %v586, %v588
        %v590 = vsel %vm589, %v585, -inf
        %591 = vmax.xlane.f32.xlu0 %v590
        %v592 = vpop.xlane.xlu0 %591
        %v593 = vcvt.f32.s32 %v592
        %v594 = vcvt.f32.s32 %v588
        %v595 = vshll.u32 %v594, 16
        %v596 = vadd.s32 %v595, %v593
        %v597 = vand.u32 %v578, 65535
        %v598 = vshra.s32 %v578, 16
        %v599 = vcvt.s32.f32 %v597
        %v600 = vcvt.s32.f32 %v598
        %601 = vmax.xlane.f32.xlu0 %v600
        %v602 = vpop.xlane.xlu0 %601
        %vm603 = vcmp.eq.f32.partialorder %v600, %v602
        %v604 = vsel %vm603, %v599, -inf
        %605 = vmax.xlane.f32.xlu0 %v604
        %v606 = vpop.xlane.xlu0 %605
        %v607 = vcvt.f32.s32 %v606
        %v608 = vcvt.f32.s32 %v602
        %v609 = vshll.u32 %v608, 16
        %v610 = vadd.s32 %v609, %v607
        %v611 = vand.u32 %v596, 127
        %v612 = vand.u32 %v610, 127
        %vm613 = vcmp.eq.s32.totalorder %v407, %v611
        %vm614 = vcmp.eq.s32.totalorder %v407, %v612
        %v615 = vsel %vm613, 2147483648, %v577
        %v616 = vsel %vm614, 2147483648, %v578
        %v617 = vsel %vm613, 0.0, %v579
        %v618 = vsel %vm614, 0.0, %v580
        %v619 = vand.u32 %v615, 65535
        %v620 = vshra.s32 %v615, 16
        %v621 = vcvt.s32.f32 %v619
        %v622 = vcvt.s32.f32 %v620
        %623 = vmax.xlane.f32.xlu0 %v622
        %v624 = vpop.xlane.xlu0 %623
        %vm625 = vcmp.eq.f32.partialorder %v622, %v624
        %v626 = vsel %vm625, %v621, -inf
        %627 = vmax.xlane.f32.xlu0 %v626
        %v628 = vpop.xlane.xlu0 %627
        %v629 = vcvt.f32.s32 %v628
        %v630 = vcvt.f32.s32 %v624
        %v631 = vshll.u32 %v630, 16
        %v632 = vadd.s32 %v631, %v629
        %v633 = vand.u32 %v616, 65535
        %v634 = vshra.s32 %v616, 16
        %v635 = vcvt.s32.f32 %v633
        %v636 = vcvt.s32.f32 %v634
        %637 = vmax.xlane.f32.xlu0 %v636
        %v638 = vpop.xlane.xlu0 %637
        %vm639 = vcmp.eq.f32.partialorder %v636, %v638
        %v640 = vsel %vm639, %v635, -inf
        %641 = vmax.xlane.f32.xlu0 %v640
        %v642 = vpop.xlane.xlu0 %641
        %v643 = vcvt.f32.s32 %v642
        %v644 = vcvt.f32.s32 %v638
        %v645 = vshll.u32 %v644, 16
        %v646 = vadd.s32 %v645, %v643
        %v647 = vand.u32 %v632, 127
        %v648 = vand.u32 %v646, 127
        %vm649 = vcmp.eq.s32.totalorder %v407, %v647
        %vm650 = vcmp.eq.s32.totalorder %v407, %v648
        %v651 = vsel %vm650, 2147483648, %v616
        %v652 = vsel %vm649, 0.0, %v617
        %v653 = vsel %vm650, 0.0, %v618
        %654 = vadd.xlane.f32.xlu0 %v652
        %v655 = vpop.xlane.xlu0 %654
        %v656 = vand.u32 %v651, 65535
        %v657 = vshra.s32 %v651, 16
        %v658 = vcvt.s32.f32 %v656
        %v659 = vcvt.s32.f32 %v657
        %660 = vmax.xlane.f32.xlu0 %v659
        %v661 = vpop.xlane.xlu0 %660
        %vm662 = vcmp.eq.f32.partialorder %v659, %v661
        %v663 = vsel %vm662, %v658, -inf
        %664 = vmax.xlane.f32.xlu0 %v663
        %v665 = vpop.xlane.xlu0 %664
        %v666 = vcvt.f32.s32 %v665
        %v667 = vcvt.f32.s32 %v661
        %v668 = vshll.u32 %v667, 16
        %v669 = vadd.s32 %v668, %v666
        %v670 = vand.u32 %v669, 127
        %vm671 = vcmp.eq.s32.totalorder %v407, %v670
        %v672 = vsel %vm671, 2147483648, %v651
        %v673 = vsel %vm671, 0.0, %v653
        %v674 = vand.u32 %v672, 65535
        %v675 = vshra.s32 %v672, 16
        %v676 = vcvt.s32.f32 %v674
        %v677 = vcvt.s32.f32 %v675
        %678 = vmax.xlane.f32.xlu0 %v677
        %v679 = vpop.xlane.xlu0 %678
        %vm680 = vcmp.eq.f32.partialorder %v677, %v679
        %v681 = vsel %vm680, %v676, -inf
        %682 = vmax.xlane.f32.xlu0 %v681
        %v683 = vpop.xlane.xlu0 %682
        %v684 = vcvt.f32.s32 %v683
        %v685 = vcvt.f32.s32 %v679
        %v686 = vshll.u32 %v685, 16
        %v687 = vadd.s32 %v686, %v684
        %v688 = vand.u32 %v687, 127
        %vm689 = vcmp.eq.s32.totalorder %v407, %v688
        %v690 = vsel %vm689, 2147483648, %v672
        %v691 = vsel %vm689, 0.0, %v673
        %692 = vadd.xlane.f32.xlu0 %v691
        %v693 = vpop.xlane.xlu0 %692
        %v694 = vand.u32 %v690, 65535
        %v695 = vshra.s32 %v690, 16
        %v696 = vcvt.s32.f32 %v694
        %v697 = vcvt.s32.f32 %v695
        %698 = vmax.xlane.f32.xlu0 %v697
        %v699 = vpop.xlane.xlu0 %698
        %vm700 = vcmp.eq.f32.partialorder %v697, %v699
        %v701 = vsel %vm700, %v696, -inf
        %702 = vmax.xlane.f32.xlu0 %v701
        %v703 = vpop.xlane.xlu0 %702
        %v704 = vcvt.f32.s32 %v703
        %v705 = vcvt.f32.s32 %v699
        %v706 = vshll.u32 %v705, 16
        %v707 = vadd.s32 %v706, %v704
        %v708 = vand.u32 %v707, 127
        %vm709 = vcmp.eq.s32.totalorder %v407, %v708
        %v710 = vsel %vm709, 2147483648, %v690
        %v711 = vsel %vm709, 0.0, %v691
        %v712 = vand.u32 %v710, 65535
        %v713 = vshra.s32 %v710, 16
        %v714 = vcvt.s32.f32 %v712
        %v715 = vcvt.s32.f32 %v713
        %716 = vmax.xlane.f32.xlu0 %v715
        %v717 = vpop.xlane.xlu0 %716
        %vm718 = vcmp.eq.f32.partialorder %v715, %v717
        %v719 = vsel %vm718, %v714, -inf
        %720 = vmax.xlane.f32.xlu0 %v719
        %v721 = vpop.xlane.xlu0 %720
        %v722 = vcvt.f32.s32 %v721
        %v723 = vcvt.f32.s32 %v717
        %v724 = vshll.u32 %v723, 16
        %v725 = vadd.s32 %v724, %v722
        %v726 = vand.u32 %v725, 127
        %vm727 = vcmp.eq.s32.totalorder %v407, %v726
        %v728 = vsel %vm727, 2147483648, %v710
        %v729 = vsel %vm727, 0.0, %v711
        %v730 = vand.u32 %v728, 65535
        %v731 = vshra.s32 %v728, 16
        %v732 = vcvt.s32.f32 %v730
        %v733 = vcvt.s32.f32 %v731
        %734 = vmax.xlane.f32.xlu0 %v733
        %v735 = vpop.xlane.xlu0 %734
        %vm736 = vcmp.eq.f32.partialorder %v733, %v735
        %v737 = vsel %vm736, %v732, -inf
        %738 = vmax.xlane.f32.xlu0 %v737
        %v739 = vpop.xlane.xlu0 %738
        %v740 = vcvt.f32.s32 %v739
        %v741 = vcvt.f32.s32 %v735
        %v742 = vshll.u32 %v741, 16
        %v743 = vadd.s32 %v742, %v740
        %v744 = vand.u32 %v743, 127
        %vm745 = vcmp.eq.s32.totalorder %v407, %v744
        %v746 = vsel %vm745, 2147483648, %v728
        %v747 = vsel %vm745, 0.0, %v729
        %v748 = vand.u32 %v746, 65535
        %v749 = vshra.s32 %v746, 16
        %v750 = vcvt.s32.f32 %v748
        %v751 = vcvt.s32.f32 %v749
        %752 = vmax.xlane.f32.xlu0 %v751
        %v753 = vpop.xlane.xlu0 %752
        %vm754 = vcmp.eq.f32.partialorder %v751, %v753
        %v755 = vsel %vm754, %v750, -inf
        %756 = vmax.xlane.f32.xlu0 %v755
        %v757 = vpop.xlane.xlu0 %756
        %v758 = vcvt.f32.s32 %v757
        %v759 = vcvt.f32.s32 %v753
        %v760 = vshll.u32 %v759, 16
        %v761 = vadd.s32 %v760, %v758
        %v762 = vand.u32 %v761, 127
        %vm763 = vcmp.eq.s32.totalorder %v407, %v762
        %v764 = vsel %vm763, 0.0, %v747
        %765 = vadd.xlane.f32.xlu0 %v764
        %v766 = vpop.xlane.xlu0 %765
        %v767 = vsub.f32 %v434, %v582
        %v768 = vsub.f32 %v436, %v693
        %v769 = vlog2.pop %v655
        %v770 = vmul.f32 %v769, 0.6931472
        %v771 = vlog2.pop %v767
        %v772 = vmul.f32 %v771, 0.6931472
        %v773 = vsub.f32 %v770, %v772
        %v774 = vadd.f32 %v773, 12.0
        %v775 = vmax.f32 %v774, 0.0
        %v776 = vlog2.pop %v766
        %v777 = vmul.f32 %v776, 0.6931472
        %v778 = vlog2.pop %v768
        %v779 = vmul.f32 %v778, 0.6931472
        %v780 = vsub.f32 %v777, %v779
        %v781 = vadd.f32 %v780, 5.0
        %v782 = vmax.f32 %v781, 0.0
        %v783 = vadd.f32 %v775, %v782
        %v784 = vlaneseq
        %v785 = vshrl.u32 %v784, 7
        %s786 = smul.u32 %s24, 8
        %v787 = vstv %s786
        %v788 = vadd.s32 %v785, %v787
        %vm789 = vcmp.lt.s32.totalorder %v788, 8
        %v790 = vsel %vm789, %v783, 0.0
        %v791 = vrot.slane %v790, 4
        %v792 = vadd.f32 %v790, %v791
        %v793 = vrot.slane %v792, 2
        %v794 = vadd.f32 %v792, %v793
        %v795 = vrot.slane %v794, 1
        %v796 = vadd.f32 %v794, %v795
        %vm797 = vcmask 0
        %798 = vst.msk [vmem:[%s321] sm:$0x1] %vm797, %v796
        %p799 = scmp.lt.s32.totalorder %s23, 1
        %s800 = scalar_select %p799, %s23, 1
        %p801 = scmp.lt.s32.totalorder %s24, 0
        %s802 = scalar_select %p801, %s24, 0
        %s803 = sadd.s32 %s802, %s800
        %s804 = scalar_lea.vmem %s5, %s803
        // Predicated region
        $region45: #{tpu_custom_call.1} parent=39 // pred_check
          %p805 = pneg %p178
        $region46: #{tpu_custom_call.1} parent=39 // pred_check_branch
          %807 = sbr.rel (%p805) target = $region48
        $region47: #{tpu_custom_call.1} parent=39 // pred_region
          _
        $region48: #{tpu_custom_call.1} parent=39 // pred_fallthru
          _
      $region40: #{tpu_custom_call.1} parent=5 // pred_fallthru
        _
      %p808 = scmp.le.s32.totalorder 2, %s14
      // Predicated region
      $region49: #{tpu_custom_call.1} parent=5 // pred_check
        %p809 = pneg %p808
      $region50: #{tpu_custom_call.1} parent=5 // pred_check_branch
        %811 = sbr.rel (%p809) target = $region52
      $region51: #{tpu_custom_call.1} parent=5 // pred_region
        %s812 = ssub.s32 %s14, 2
        // Predicated region
        $region53: #{tpu_custom_call.1} parent=51 // pred_check
          %p813 = pneg %p184
        $region54: #{tpu_custom_call.1} parent=51 // pred_check_branch
          %815 = sbr.rel (%p813) target = $region56
        $region55: #{tpu_custom_call.1} parent=51 // pred_region
          %p816 = scmp.lt.s32.totalorder %s25, 1
          %s817 = scalar_select %p816, %s25, 1
          %p818 = scmp.lt.s32.totalorder %s26, 0
          %s819 = scalar_select %p818, %s26, 0
          %s820 = sadd.s32 %s819, %s817
          %s821 = scalar_lea.vmem %s5, %s820
        $region56: #{tpu_custom_call.1} parent=51 // pred_fallthru
          _
      $region52: #{tpu_custom_call.1} parent=5 // pred_fallthru
        _
    $region6: #{tpu_custom_call.1} parent=1 // loop_footer
      %s18 = sadd.s32 1, %s14
    $region7: #{tpu_custom_call.1} parent=1 // loop_footer_branch
      %13 = sbr.rel target = $region3
    $region8: #{tpu_custom_call.1} parent=1 // loop_exit
      _
    %822 = vsyncpa [#allocation3], 1
    %s823 = scalar_lea.sflag [#allocation3], 1
    %824 = vsyncpa %s823, 1

</llo_original>
